<compile_context>
chip_gen: v7x
topology: tpu7x:2x2x1
jax: 0.10.0
libtpu: 0.0.40
codegen_flags: <defaults>
</compile_context>

<pallas_src>
import functools

import jax
import jax.numpy as jnp
from jax.experimental import pallas as pl
from jax.experimental.pallas import tpu as pltpu

IN_DIM, H1, H2, OUT_DIM = 64, 164, 150, 4
IN_PAD = 128          # padded contraction dim of layer 1 (x tile lane width)
H1_PAD = 256          # padded contraction dim of layer 2
H2_PAD = 256          # padded contraction dim of layer 3
N_LANES = 256         # lane width of the layers-1/2 weight slab
OUT_PAD = 128         # lane width of the layer-3 slab / output tile
W12_ROWS = IN_PAD + H1_PAD            # 384 rows in the layers-1/2 slab

MIN_TILE_B = 16       # bf16 vreg is (16, 128): never go below 16 rows
MAX_TILE_B = 128      # fills the MXU LHS rows; VMEM is a non-issue at this size


# ---------------------------------------------------------------------------
# Kernel: weights VMEM-resident across the batch grid (constant index_map).
# ---------------------------------------------------------------------------
def _qfunction_kernel(x_ref, w12_ref, w3_ref, o_ref):
    x = x_ref[...]                                  # (tile_b, 128) bf16, ones lane at col 64
    w1 = w12_ref[0:IN_PAD, :]                       # (128, 256) bf16, bias row at 64
    w2 = w12_ref[IN_PAD:W12_ROWS, :]                # (256, 256) bf16, bias row at 164

    # layer 1 (bias folded into w1's row 64, activated by the ones lane)
    h1 = jnp.maximum(jnp.dot(x, w1, preferred_element_type=jnp.float32), 0.0)
    # layer 2 (ones lane propagated into h1[:,164] by the packing)
    h2 = jnp.maximum(
        jnp.dot(h1.astype(jnp.bfloat16), w2, preferred_element_type=jnp.float32), 0.0)
    # layer 3 (no activation), 128-lane output -> unmasked stores
    o_ref[...] = jnp.dot(h2.astype(jnp.bfloat16), w3_ref[...],
                         preferred_element_type=jnp.float32)


@functools.lru_cache(maxsize=None)
def _build_call(tile_b, num_tiles):
    b_pad = tile_b * num_tiles
    flops = 2 * b_pad * (IN_PAD * N_LANES + H1_PAD * N_LANES + H2_PAD * OUT_PAD)
    bytes_accessed = (b_pad * IN_PAD * 2              # x tiles (bf16)
                      + W12_ROWS * N_LANES * 2        # layers-1/2 slab, fetched once
                      + H2_PAD * OUT_PAD * 2          # layer-3 slab, fetched once
                      + b_pad * OUT_PAD * 4)          # f32 output
    return pl.pallas_call(
        _qfunction_kernel,
        out_shape=jax.ShapeDtypeStruct((b_pad, OUT_PAD), jnp.float32),
        grid=(num_tiles,),
        in_specs=[
            pl.BlockSpec((tile_b, IN_PAD), lambda i: (i, 0)),
            # constant block index -> weight slabs stay resident in VMEM
            pl.BlockSpec((W12_ROWS, N_LANES), lambda i: (0, 0)),
            pl.BlockSpec((H2_PAD, OUT_PAD), lambda i: (0, 0)),
        ],
        out_specs=pl.BlockSpec((tile_b, OUT_PAD), lambda i: (i, 0)),
        compiler_params=pltpu.CompilerParams(
            dimension_semantics=("parallel",)),       # 2 TCs on v7x split the batch
        cost_estimate=pl.CostEstimate(
            flops=flops, transcendentals=0, bytes_accessed=bytes_accessed),
    )


# ---------------------------------------------------------------------------
# One-time parameter packing (hoisted out of the per-call path).
# ---------------------------------------------------------------------------
def pack_params(params):
    """Pack (w1,b1,w2,b2,w3,b3) into two bf16 slabs: (384,256) and (256,128).

    Each layer block holds its weight in (in, out) layout plus one "bias" row;
    that row also carries a 1.0 at the next layer's ones-lane column so the bias
    trick propagates through the network (invariant: padding stays exactly 0 and
    the ones lane stays +1.0 through ReLU / bf16).
    """
    w1, b1, w2, b2, w3, b3 = params

    w12 = jnp.zeros((W12_ROWS, N_LANES), jnp.float32)
    # layer 1 block: rows [0, 128)
    w12 = w12.at[:IN_DIM, :H1].set(w1)
    w12 = w12.at[IN_DIM, :H1].set(b1)          # bias row, hit by the ones lane (col 64 of x)
    w12 = w12.at[IN_DIM, H1].set(1.0)          # propagate ones lane into h1[:,164]
    # layer 2 block: rows [128, 384)
    r = IN_PAD
    w12 = w12.at[r:r + H1, :H2].set(w2)
    w12 = w12.at[r + H1, :H2].set(b2)
    w12 = w12.at[r + H1, H2].set(1.0)          # propagate ones lane into h2[:,150]

    w3s = jnp.zeros((H2_PAD, OUT_PAD), jnp.float32)
    w3s = w3s.at[:H2, :OUT_DIM].set(w3)
    w3s = w3s.at[H2, :OUT_DIM].set(b3)

    return w12.astype(jnp.bfloat16), w3s.astype(jnp.bfloat16)


# ---------------------------------------------------------------------------
# Forward wrappers.
# ---------------------------------------------------------------------------
def _round_up(n, m):
    return ((n + m - 1) // m) * m


@jax.jit
def qfunction_forward_batch(xb, w12, w3):
    """xb: (B, ...) with 64 features per state (any B). Returns (B, 4) f32."""
    b = xb.shape[0]
    xf = jnp.reshape(xb, (b, IN_DIM)).astype(jnp.bfloat16)
    # Build the (B, 128) activation tile [x | 1 | 0...] in one concatenate;
    # the ones lane (col 64) activates the folded bias rows in the slab.
    x128 = jnp.concatenate(
        [xf,
         jnp.ones((b, 1), jnp.bfloat16),
         jnp.zeros((b, IN_PAD - IN_DIM - 1), jnp.bfloat16)], axis=1)

    # Tile sizing: >=16 rows (bf16 vreg), up to 128 rows per grid step.
    if b <= MAX_TILE_B:
        tile_b = max(MIN_TILE_B, _round_up(b, MIN_TILE_B))
        num_tiles = 1
    else:
        tile_b = MAX_TILE_B
        num_tiles = _round_up(b, MAX_TILE_B) // MAX_TILE_B
    b_pad = tile_b * num_tiles
    if b_pad != b:
        x128 = jnp.pad(x128, ((0, b_pad - b), (0, 0)))   # padded rows -> zero outputs

    out = _build_call(tile_b, num_tiles)(x128, w12, w3)   # (b_pad, 128) f32
    return out[:b, :OUT_DIM]


def qfunction_forward(x, w12, w3):
    """Single state (any shape with 64 elements, e.g. (8,8)). Returns (4,) f32."""
    return qfunction_forward_batch(jnp.reshape(x, (1, -1)), w12, w3)[0]


# ---------------------------------------------------------------------------
# Init + reference (pure f32, mimics nn.Linear default init).
# ---------------------------------------------------------------------------
def init_params(key):
    ks = jax.random.split(key, 6)

    def lin(kw, kb, fan_in, fan_out):
        bound = 1.0 / jnp.sqrt(jnp.float32(fan_in))
        w = jax.random.uniform(kw, (fan_in, fan_out), jnp.float32, -bound, bound)
        b = jax.random.uniform(kb, (fan_out,), jnp.float32, -bound, bound)
        return w, b

    w1, b1 = lin(ks[0], ks[1], IN_DIM, H1)
    w2, b2 = lin(ks[2], ks[3], H1, H2)
    w3, b3 = lin(ks[4], ks[5], H2, OUT_DIM)
    return (w1, b1, w2, b2, w3, b3)


def _reference(x, params):
    w1, b1, w2, b2, w3, b3 = params
    h = jnp.reshape(x, (-1,)).astype(jnp.float32)
    h = jnp.maximum(h @ w1 + b1, 0.0)
    h = jnp.maximum(h @ w2 + b2, 0.0)
    return h @ w3 + b3


if __name__ == "__main__":
    key = jax.random.PRNGKey(0)
    k_param, k_x = jax.random.split(key)

    params = init_params(k_param)
    w12, w3 = jax.block_until_ready(pack_params(params))   # one-time packing

    # single gridworld state: 8x8 board -> 64 flattened features (module semantics)
    x = jax.random.normal(k_x, (8, 8), jnp.float32)
    out = jax.block_until_ready(qfunction_forward(x, w12, w3))
    ref = _reference(x, params)
    assert out.shape == (4,)
    # bf16 weights/activations -> relaxed tolerance vs. f32 reference
    assert jnp.allclose(out, ref, atol=5e-2, rtol=5e-2)

    # batched path: 160 states -> 2 grid tiles of 128 rows, weights stay VMEM-resident
    xb = jax.random.normal(k_x, (160, 8, 8), jnp.float32)
    outb = jax.block_until_ready(qfunction_forward_batch(xb, w12, w3))
    refb = jax.vmap(lambda s: _reference(s, params))(xb)
    assert outb.shape == (160, 4)
    assert jnp.allclose(outb, refb, atol=5e-2, rtol=5e-2)

    print("KERNEL_OK")
</pallas_src>

<mosaic_0001>
module attributes {stable_mosaic.version = 11 : i64} {
  func.func @_qfunction_kernel(%arg0: i32, %arg1: memref<16x128xbf16, #tpu.memory_space<vmem>>, %arg2: memref<384x256xbf16, #tpu.memory_space<vmem>>, %arg3: memref<256x128xbf16, #tpu.memory_space<vmem>>, %arg4: memref<16x128xf32, #tpu.memory_space<vmem>>) attributes {dimension_semantics = [#tpu.dimension_semantics<parallel>], iteration_bounds = array<i64: 1>, scalar_prefetch = 0 : i64, scratch_operands = 0 : i64, tpu.core_type = #tpu.core_type<tc>, window_params = [{transform_indices = @transform_0, window_bounds = array<i64: 16, 128>}, {pipeline_mode = #tpu.pipeline_mode<synchronous>, transform_indices = @transform_1, window_bounds = array<i64: 384, 256>}, {pipeline_mode = #tpu.pipeline_mode<synchronous>, transform_indices = @transform_2, window_bounds = array<i64: 256, 128>}, {transform_indices = @transform_3, window_bounds = array<i64: 16, 128>}]} {
    %c0 = arith.constant 0 : index
    %c0_0 = arith.constant 0 : index
    %0 = vector.load %arg1[%c0, %c0_0] : memref<16x128xbf16, #tpu.memory_space<vmem>>, vector<16x128xbf16>
    %c0_1 = arith.constant 0 : index
    %c0_2 = arith.constant 0 : index
    %1 = vector.load %arg2[%c0_1, %c0_2] : memref<384x256xbf16, #tpu.memory_space<vmem>>, vector<128x256xbf16>
    %c128 = arith.constant 128 : index
    %c0_3 = arith.constant 0 : index
    %2 = vector.load %arg2[%c128, %c0_3] : memref<384x256xbf16, #tpu.memory_space<vmem>>, vector<256x256xbf16>
    %cst = arith.constant dense<0.000000e+00> : vector<16x256xf32>
    %3 = tpu.matmul %0, %1, %cst {dimension_numbers = #tpu.dot_dimension_numbers<[1], [0], [0], [1], [0, 0, 1, 1], [], []>} : vector<16x128xbf16>, vector<128x256xbf16>, vector<16x256xf32> -> vector<16x256xf32>
    %cst_4 = arith.constant 0.000000e+00 : f32
    %4 = vector.broadcast %cst_4 : f32 to vector<16x256xf32>
    %5 = arith.maximumf %3, %4 : vector<16x256xf32>
    %6 = arith.truncf %5 : vector<16x256xf32> to vector<16x256xbf16>
    %cst_5 = arith.constant dense<0.000000e+00> : vector<16x256xf32>
    %7 = tpu.matmul %6, %2, %cst_5 {dimension_numbers = #tpu.dot_dimension_numbers<[1], [0], [0], [1], [0, 0, 1, 1], [], []>} : vector<16x256xbf16>, vector<256x256xbf16>, vector<16x256xf32> -> vector<16x256xf32>
    %cst_6 = arith.constant 0.000000e+00 : f32
    %8 = vector.broadcast %cst_6 : f32 to vector<16x256xf32>
    %9 = arith.maximumf %7, %8 : vector<16x256xf32>
    %10 = arith.truncf %9 : vector<16x256xf32> to vector<16x256xbf16>
    %c0_7 = arith.constant 0 : index
    %c0_8 = arith.constant 0 : index
    %11 = vector.load %arg3[%c0_7, %c0_8] : memref<256x128xbf16, #tpu.memory_space<vmem>>, vector<256x128xbf16>
    %cst_9 = arith.constant dense<0.000000e+00> : vector<16x128xf32>
    %12 = tpu.matmul %10, %11, %cst_9 {dimension_numbers = #tpu.dot_dimension_numbers<[1], [0], [0], [1], [0, 0, 1, 1], [], []>} : vector<16x256xbf16>, vector<256x128xbf16>, vector<16x128xf32> -> vector<16x128xf32>
    %c0_10 = arith.constant 0 : index
    %c0_11 = arith.constant 0 : index
    %13 = vector.load %arg4[%c0_10, %c0_11] : memref<16x128xf32, #tpu.memory_space<vmem>>, vector<16x128xf32>
    tpu.vector_store %arg4[%c0_10, %c0_11], %12 {strides = array<i32>} : memref<16x128xf32, #tpu.memory_space<vmem>>, vector<16x128xf32>,
    return
  }
  func.func @transform_0(%arg0: i32) -> (i32, i32) {
    %c0_i32 = arith.constant 0 : i32
    %c0_i32_0 = arith.constant 0 : i32
    return %arg0, %c0_i32 : i32, i32
  }
  func.func @transform_1(%arg0: i32) -> (i32, i32) {
    %c0_i32 = arith.constant 0 : i32
    %c0_i32_0 = arith.constant 0 : i32
    %c0_i32_1 = arith.constant 0 : i32
    return %c0_i32, %c0_i32_0 : i32, i32
  }
  func.func @transform_2(%arg0: i32) -> (i32, i32) {
    %c0_i32 = arith.constant 0 : i32
    %c0_i32_0 = arith.constant 0 : i32
    %c0_i32_1 = arith.constant 0 : i32
    return %c0_i32, %c0_i32_0 : i32, i32
  }
  func.func @transform_3(%arg0: i32) -> (i32, i32) {
    %c0_i32 = arith.constant 0 : i32
    %c0_i32_0 = arith.constant 0 : i32
    return %arg0, %c0_i32 : i32, i32
  }
}

</mosaic_0001>

<llo_original>
// kernel: qfunction_forward_batch.1
$region0: #{qfunction_forward_batch.1}
  #allocation0 [shape = 'u32[]', space=smem, size = 0x4, offset = 0x4, fixed_abs, tag = 'smem constant byte address 0x4 - core index']
  #allocation1 [shape = 'u32[144,128]{1,0:T(1,128)}', space=vmem, size = 0x12000, scoped, tag = 'internal scratch']
  %s0 = inlined_call_operand.vmem [shape: bf16[16,128], index: 0, kind: input, shape index: {}]
  %s1 = inlined_call_operand.hbm [shape: bf16[384,256], index: 1, kind: input, shape index: {}]
  %s2 = inlined_call_operand.hbm [shape: bf16[256,128], index: 2, kind: input, shape index: {}]
  %s3 = inlined_call_operand.vmem [shape: f32[16,128], index: 3, kind: output, shape index: {}]
  %s4 = sld [smem:[#allocation0]]
  $region30: #{qfunction_forward_batch.1} parent=0
    _
  %s6 = ssub.s32 1, %s4
  %s7 = scalar_select 0, %s6, %s4
  $region1: #{qfunction_forward_batch.1} parent=0
    #allocation2 [shape = 'u8[196608]{0}', space=vmem, size = 0x30000, scoped, tag = 'input window, operand 1, single buffered']
    #allocation3 [shape = 's32[1]{0}', space=sflag, size = 0x4, scoped, tag = 'scoped memory for qfunction_forward_batch.1']
    #allocation4 [shape = 'u8[65536]{0}', space=vmem, size = 0x10000, scoped, tag = 'input window, operand 2, single buffered']
    #allocation5 [shape = 's32[1]{0}', space=sflag, size = 0x4, scoped, tag = 'scoped memory for qfunction_forward_batch.1']
    %8 = vsyncpa [#allocation3], 0
    %9 = vsyncpa [#allocation5], 0
    // Predicated region
    $region2: #{qfunction_forward_batch.1} parent=1 // pred_check
      _
    $region3: #{qfunction_forward_batch.1} parent=1 // pred_check_branch
      %11 = sbr.rel (0) target = $region5
    $region4: #{qfunction_forward_batch.1} parent=1 // pred_region
      _
    $region5: #{qfunction_forward_batch.1} parent=1 // pred_fallthru
      _
    // Predicated region
    $region6: #{qfunction_forward_batch.1} parent=1 // pred_check
      _
    $region7: #{qfunction_forward_batch.1} parent=1 // pred_check_branch
      %13 = sbr.rel (0) target = $region9
    $region8: #{qfunction_forward_batch.1} parent=1 // pred_region
      %s15 = ssub.s32 6144, 6144
      %16 = vsyncadd [#allocation3], %s15
      %s17 = sshll.u32 [#allocation2], 4
      %s18 = int_to_ptr.vmem [resolvable:$true] %s17
      %23 = dma.hbm_to_vmem [thread:$0]  %s1, 6144, %s18, [#allocation3], 128, 128, 8
    $region9: #{qfunction_forward_batch.1} parent=1 // pred_fallthru
      _
    // Predicated region
    $region10: #{qfunction_forward_batch.1} parent=1 // pred_check
      _
    $region11: #{qfunction_forward_batch.1} parent=1 // pred_check_branch
      %25 = sbr.rel (0) target = $region13
    $region12: #{qfunction_forward_batch.1} parent=1 // pred_region
      %s27 = ssub.s32 2048, 2048
      %28 = vsyncadd [#allocation5], %s27
      %s29 = sshll.u32 [#allocation4], 4
      %s30 = int_to_ptr.vmem [resolvable:$true] %s29
      %35 = dma.hbm_to_vmem [thread:$0]  %s2, 2048, %s30, [#allocation5], 64, 64, 4
    $region13: #{qfunction_forward_batch.1} parent=1 // pred_fallthru
      _
    // Predicated region
    $region14: #{qfunction_forward_batch.1} parent=1 // pred_check
      _
    $region15: #{qfunction_forward_batch.1} parent=1 // pred_check_branch
      %37 = sbr.rel (0) target = $region17
    $region16: #{qfunction_forward_batch.1} parent=1 // pred_region
      %38 = dma.done [#allocation3], 6144
    $region17: #{qfunction_forward_batch.1} parent=1 // pred_fallthru
      _
    // Predicated region
    $region18: #{qfunction_forward_batch.1} parent=1 // pred_check
      _
    $region19: #{qfunction_forward_batch.1} parent=1 // pred_check_branch
      %40 = sbr.rel (0) target = $region21
    $region20: #{qfunction_forward_batch.1} parent=1 // pred_region
      %41 = dma.done [#allocation5], 2048
    $region21: #{qfunction_forward_batch.1} parent=1 // pred_fallthru
      _
    %v43 = vld [vmem:[%s0] sm:$0xf]
    %v44 = vld [vmem:[%s0 + $0x4] sm:$0xf]
    %v45 = vld [vmem:[#allocation2] sm:$0xff]
    %v46 = vld [vmem:[#allocation2 + $0x8] sm:$0xff]
    %v47 = vld [vmem:[#allocation2 + $0x10] sm:$0xff]
    %v48 = vld [vmem:[#allocation2 + $0x18] sm:$0xff]
    %v49 = vld [vmem:[#allocation2 + $0x20] sm:$0xff]
    %v50 = vld [vmem:[#allocation2 + $0x28] sm:$0xff]
    %v51 = vld [vmem:[#allocation2 + $0x30] sm:$0xff]
    %v52 = vld [vmem:[#allocation2 + $0x38] sm:$0xff]
    %v53 = vld [vmem:[#allocation2 + $0x40] sm:$0xff]
    %v54 = vld [vmem:[#allocation2 + $0x48] sm:$0xff]
    %v55 = vld [vmem:[#allocation2 + $0x50] sm:$0xff]
    %v56 = vld [vmem:[#allocation2 + $0x58] sm:$0xff]
    %v57 = vld [vmem:[#allocation2 + $0x60] sm:$0xff]
    %v58 = vld [vmem:[#allocation2 + $0x68] sm:$0xff]
    %v59 = vld [vmem:[#allocation2 + $0x70] sm:$0xff]
    %v60 = vld [vmem:[#allocation2 + $0x78] sm:$0xff]
    %v61 = vld [vmem:[#allocation2 + $0x80] sm:$0xff]
    %v62 = vld [vmem:[#allocation2 + $0x88] sm:$0xff]
    %v63 = vld [vmem:[#allocation2 + $0x90] sm:$0xff]
    %v64 = vld [vmem:[#allocation2 + $0x98] sm:$0xff]
    %v65 = vld [vmem:[#allocation2 + $0xa0] sm:$0xff]
    %v66 = vld [vmem:[#allocation2 + $0xa8] sm:$0xff]
    %v67 = vld [vmem:[#allocation2 + $0xb0] sm:$0xff]
    %v68 = vld [vmem:[#allocation2 + $0xb8] sm:$0xff]
    %v69 = vld [vmem:[#allocation2 + $0xc0] sm:$0xff]
    %v70 = vld [vmem:[#allocation2 + $0xc8] sm:$0xff]
    %v71 = vld [vmem:[#allocation2 + $0xd0] sm:$0xff]
    %v72 = vld [vmem:[#allocation2 + $0xd8] sm:$0xff]
    %v73 = vld [vmem:[#allocation2 + $0xe0] sm:$0xff]
    %v74 = vld [vmem:[#allocation2 + $0xe8] sm:$0xff]
    %v75 = vld [vmem:[#allocation2 + $0xf0] sm:$0xff]
    %v76 = vld [vmem:[#allocation2 + $0xf8] sm:$0xff]
    %v77 = vld [vmem:[#allocation2 + $0x100] sm:$0xff]
    %v78 = vld [vmem:[#allocation2 + $0x108] sm:$0xff]
    %v79 = vld [vmem:[#allocation2 + $0x110] sm:$0xff]
    %v80 = vld [vmem:[#allocation2 + $0x118] sm:$0xff]
    %v81 = vld [vmem:[#allocation2 + $0x120] sm:$0xff]
    %v82 = vld [vmem:[#allocation2 + $0x128] sm:$0xff]
    %v83 = vld [vmem:[#allocation2 + $0x130] sm:$0xff]
    %v84 = vld [vmem:[#allocation2 + $0x138] sm:$0xff]
    %v85 = vld [vmem:[#allocation2 + $0x140] sm:$0xff]
    %v86 = vld [vmem:[#allocation2 + $0x148] sm:$0xff]
    %v87 = vld [vmem:[#allocation2 + $0x150] sm:$0xff]
    %v88 = vld [vmem:[#allocation2 + $0x158] sm:$0xff]
    %v89 = vld [vmem:[#allocation2 + $0x160] sm:$0xff]
    %v90 = vld [vmem:[#allocation2 + $0x168] sm:$0xff]
    %v91 = vld [vmem:[#allocation2 + $0x170] sm:$0xff]
    %v92 = vld [vmem:[#allocation2 + $0x178] sm:$0xff]
    %v95 = vunpack.c.l.b16 %v43
    %v96 = vunpack.c.l.b16 %v44
    %v97 = vpack.c.b16 %v96, %v95
    %v115 = vunpack.c.l.b16 %v45
    %v116 = vunpack.c.h.b16 %v45
    %v117 = vunpack.c.l.b16 %v46
    %v118 = vunpack.c.h.b16 %v46
    %v119 = vunpack.c.l.b16 %v47
    %v120 = vunpack.c.h.b16 %v47
    %v121 = vunpack.c.l.b16 %v48
    %v122 = vunpack.c.h.b16 %v48
    %v123 = vunpack.c.l.b16 %v49
    %v124 = vunpack.c.h.b16 %v49
    %v125 = vunpack.c.l.b16 %v50
    %v126 = vunpack.c.h.b16 %v50
    %v127 = vunpack.c.l.b16 %v51
    %v128 = vunpack.c.h.b16 %v51
    %v129 = vunpack.c.l.b16 %v52
    %v130 = vunpack.c.h.b16 %v52
    %v131 = vunpack.c.l.b16 %v53
    %v132 = vunpack.c.h.b16 %v53
    %v133 = vunpack.c.l.b16 %v54
    %v134 = vunpack.c.h.b16 %v54
    %v135 = vunpack.c.l.b16 %v55
    %v136 = vunpack.c.h.b16 %v55
    %v137 = vunpack.c.l.b16 %v56
    %v138 = vunpack.c.h.b16 %v56
    %v139 = vunpack.c.l.b16 %v57
    %v140 = vunpack.c.h.b16 %v57
    %v141 = vunpack.c.l.b16 %v58
    %v142 = vunpack.c.h.b16 %v58
    %v143 = vunpack.c.l.b16 %v59
    %v144 = vunpack.c.h.b16 %v59
    %v145 = vunpack.c.l.b16 %v60
    %v146 = vunpack.c.h.b16 %v60
    %v147 = vpack.c.b16 %v117, %v115
    %v148 = vpack.c.b16 %v118, %v116
    %v149 = vpack.c.b16 %v121, %v119
    %v150 = vpack.c.b16 %v122, %v120
    %v151 = vpack.c.b16 %v125, %v123
    %v152 = vpack.c.b16 %v126, %v124
    %v153 = vpack.c.b16 %v129, %v127
    %v154 = vpack.c.b16 %v130, %v128
    %v155 = vpack.c.b16 %v133, %v131
    %v156 = vpack.c.b16 %v134, %v132
    %v157 = vpack.c.b16 %v137, %v135
    %v158 = vpack.c.b16 %v138, %v136
    %v159 = vpack.c.b16 %v141, %v139
    %v160 = vpack.c.b16 %v142, %v140
    %v161 = vpack.c.b16 %v145, %v143
    %v162 = vpack.c.b16 %v146, %v144
    %179 = vmatprep.subr.bf16.mxu0 %v148
    %180 = vmatpush1.bf16.msra.mxu0 %v147
    %181 = vmatprep.subr.bf16.mxu0 %v150
    %182 = vmatpush1.bf16.msra.mxu0 %v149
    %183 = vmatprep.subr.bf16.mxu0 %v152
    %184 = vmatpush1.bf16.msra.mxu0 %v151
    %185 = vmatprep.subr.bf16.mxu0 %v154
    %186 = vmatpush1.bf16.msra.mxu0 %v153
    %187 = vmatprep.subr.bf16.mxu0 %v156
    %188 = vmatpush1.bf16.msra.mxu0 %v155
    %189 = vmatprep.subr.bf16.mxu0 %v158
    %190 = vmatpush1.bf16.msra.mxu0 %v157
    %191 = vmatprep.subr.bf16.mxu0 %v160
    %192 = vmatpush1.bf16.msra.mxu0 %v159
    %193 = vmatprep.subr.bf16.mxu0 %v162
    %194 = vmatpush1.bf16.msra.mxu0 %v161
    %195 = vmatprep.subr.bf16.mxu0 0
    %196 = vmatpush1.bf16.msra.mxu0 0
    %197 = vmatprep.subr.bf16.mxu0 0
    %198 = vmatpush1.bf16.msra.mxu0 0
    %199 = vmatprep.subr.bf16.mxu0 0
    %200 = vmatpush1.bf16.msra.mxu0 0
    %201 = vmatprep.subr.bf16.mxu0 0
    %202 = vmatpush1.bf16.msra.mxu0 0
    %203 = vmatprep.subr.bf16.mxu0 0
    %204 = vmatpush1.bf16.msra.mxu0 0
    %205 = vmatprep.subr.bf16.mxu0 0
    %206 = vmatpush1.bf16.msra.mxu0 0
    %207 = vmatprep.subr.bf16.mxu0 0
    %208 = vmatpush1.bf16.msra.mxu0 0
    %209 = vmatprep.subr.bf16.mxu0 0
    %210 = vmatpush1.bf16.msra.mxu0 0
    %211 = vmatprep.mubr.bf16.mxu0 0
    %212 = vmatmul.mubr.bf16.gmra.mrb[0].mxu0 %v97
    %v213 = vpop.f32.mrb[0].mxu0
    %v214 = vadd.f32 0.0, %v213
    %v215 = vpop.f32.mrb[0].mxu0
    %v216 = vadd.f32 0.0, %v215
    %v217 = vpop.f32.mrb[0].mxu0
    %v218 = vadd.f32 0.0, %v217
    %v219 = vpop.f32.mrb[0].mxu0
    %v220 = vadd.f32 0.0, %v219
    %221 = vdwg.mxu0
    %v222 = vmax.f32 %v214, 0.0
    %v223 = vmax.f32 %v216, 0.0
    %v224 = vmax.f32 %v218, 0.0
    %v225 = vmax.f32 %v220, 0.0
    %v226 = vpack.c.bf16 %v224, %v222
    %v227 = vpack.c.bf16 %v225, %v223
    %v260 = vunpack.c.l.b16 %v61
    %v261 = vunpack.c.h.b16 %v61
    %v262 = vunpack.c.l.b16 %v62
    %v263 = vunpack.c.h.b16 %v62
    %v264 = vunpack.c.l.b16 %v63
    %v265 = vunpack.c.h.b16 %v63
    %v266 = vunpack.c.l.b16 %v64
    %v267 = vunpack.c.h.b16 %v64
    %v268 = vunpack.c.l.b16 %v65
    %v269 = vunpack.c.h.b16 %v65
    %v270 = vunpack.c.l.b16 %v66
    %v271 = vunpack.c.h.b16 %v66
    %v272 = vunpack.c.l.b16 %v67
    %v273 = vunpack.c.h.b16 %v67
    %v274 = vunpack.c.l.b16 %v68
    %v275 = vunpack.c.h.b16 %v68
    %v276 = vunpack.c.l.b16 %v69
    %v277 = vunpack.c.h.b16 %v69
    %v278 = vunpack.c.l.b16 %v70
    %v279 = vunpack.c.h.b16 %v70
    %v280 = vunpack.c.l.b16 %v71
    %v281 = vunpack.c.h.b16 %v71
    %v282 = vunpack.c.l.b16 %v72
    %v283 = vunpack.c.h.b16 %v72
    %v284 = vunpack.c.l.b16 %v73
    %v285 = vunpack.c.h.b16 %v73
    %v286 = vunpack.c.l.b16 %v74
    %v287 = vunpack.c.h.b16 %v74
    %v288 = vunpack.c.l.b16 %v75
    %v289 = vunpack.c.h.b16 %v75
    %v290 = vunpack.c.l.b16 %v76
    %v291 = vunpack.c.h.b16 %v76
    %v292 = vunpack.c.l.b16 %v77
    %v293 = vunpack.c.h.b16 %v77
    %v294 = vunpack.c.l.b16 %v78
    %v295 = vunpack.c.h.b16 %v78
    %v296 = vunpack.c.l.b16 %v79
    %v297 = vunpack.c.h.b16 %v79
    %v298 = vunpack.c.l.b16 %v80
    %v299 = vunpack.c.h.b16 %v80
    %v300 = vunpack.c.l.b16 %v81
    %v301 = vunpack.c.h.b16 %v81
    %v302 = vunpack.c.l.b16 %v82
    %v303 = vunpack.c.h.b16 %v82
    %v304 = vunpack.c.l.b16 %v83
    %v305 = vunpack.c.h.b16 %v83
    %v306 = vunpack.c.l.b16 %v84
    %v307 = vunpack.c.h.b16 %v84
    %v308 = vunpack.c.l.b16 %v85
    %v309 = vunpack.c.h.b16 %v85
    %v310 = vunpack.c.l.b16 %v86
    %v311 = vunpack.c.h.b16 %v86
    %v312 = vunpack.c.l.b16 %v87
    %v313 = vunpack.c.h.b16 %v87
    %v314 = vunpack.c.l.b16 %v88
    %v315 = vunpack.c.h.b16 %v88
    %v316 = vunpack.c.l.b16 %v89
    %v317 = vunpack.c.h.b16 %v89
    %v318 = vunpack.c.l.b16 %v90
    %v319 = vunpack.c.h.b16 %v90
    %v320 = vunpack.c.l.b16 %v91
    %v321 = vunpack.c.h.b16 %v91
    %v322 = vunpack.c.l.b16 %v92
    %v323 = vunpack.c.h.b16 %v92
    %v324 = vpack.c.b16 %v262, %v260
    %v325 = vpack.c.b16 %v263, %v261
    %v326 = vpack.c.b16 %v266, %v264
    %v327 = vpack.c.b16 %v267, %v265
    %v328 = vpack.c.b16 %v270, %v268
    %v329 = vpack.c.b16 %v271, %v269
    %v330 = vpack.c.b16 %v274, %v272
    %v331 = vpack.c.b16 %v275, %v273
    %v332 = vpack.c.b16 %v278, %v276
    %v333 = vpack.c.b16 %v279, %v277
    %v334 = vpack.c.b16 %v282, %v280
    %v335 = vpack.c.b16 %v283, %v281
    %v336 = vpack.c.b16 %v286, %v284
    %v337 = vpack.c.b16 %v287, %v285
    %v338 = vpack.c.b16 %v290, %v288
    %v339 = vpack.c.b16 %v291, %v289
    %v340 = vpack.c.b16 %v294, %v292
    %v341 = vpack.c.b16 %v295, %v293
    %v342 = vpack.c.b16 %v298, %v296
    %v343 = vpack.c.b16 %v299, %v297
    %v344 = vpack.c.b16 %v302, %v300
    %v345 = vpack.c.b16 %v303, %v301
    %v346 = vpack.c.b16 %v306, %v304
    %v347 = vpack.c.b16 %v307, %v305
    %v348 = vpack.c.b16 %v310, %v308
    %v349 = vpack.c.b16 %v311, %v309
    %v350 = vpack.c.b16 %v314, %v312
    %v351 = vpack.c.b16 %v315, %v313
    %v352 = vpack.c.b16 %v318, %v316
    %v353 = vpack.c.b16 %v319, %v317
    %v354 = vpack.c.b16 %v322, %v320
    %v355 = vpack.c.b16 %v323, %v321
    %388 = vmatprep.subr.bf16.mxu0 %v325
    %389 = vmatpush1.bf16.msra.mxu0 %v324
    %390 = vmatprep.subr.bf16.mxu0 %v327
    %391 = vmatpush1.bf16.msra.mxu0 %v326
    %392 = vmatprep.subr.bf16.mxu0 %v329
    %393 = vmatpush1.bf16.msra.mxu0 %v328
    %394 = vmatprep.subr.bf16.mxu0 %v331
    %395 = vmatpush1.bf16.msra.mxu0 %v330
    %396 = vmatprep.subr.bf16.mxu0 %v333
    %397 = vmatpush1.bf16.msra.mxu0 %v332
    %398 = vmatprep.subr.bf16.mxu0 %v335
    %399 = vmatpush1.bf16.msra.mxu0 %v334
    %400 = vmatprep.subr.bf16.mxu0 %v337
    %401 = vmatpush1.bf16.msra.mxu0 %v336
    %402 = vmatprep.subr.bf16.mxu0 %v339
    %403 = vmatpush1.bf16.msra.mxu0 %v338
    %404 = vmatprep.subr.bf16.mxu0 %v341
    %405 = vmatpush1.bf16.msra.mxu0 %v340
    %406 = vmatprep.subr.bf16.mxu0 %v343
    %407 = vmatpush1.bf16.msra.mxu0 %v342
    %408 = vmatprep.subr.bf16.mxu0 %v345
    %409 = vmatpush1.bf16.msra.mxu0 %v344
    %410 = vmatprep.subr.bf16.mxu0 %v347
    %411 = vmatpush1.bf16.msra.mxu0 %v346
    %412 = vmatprep.subr.bf16.mxu0 %v349
    %413 = vmatpush1.bf16.msra.mxu0 %v348
    %414 = vmatprep.subr.bf16.mxu0 %v351
    %415 = vmatpush1.bf16.msra.mxu0 %v350
    %416 = vmatprep.subr.bf16.mxu0 %v353
    %417 = vmatpush1.bf16.msra.mxu0 %v352
    %418 = vmatprep.subr.bf16.mxu0 %v355
    %419 = vmatpush1.bf16.msra.mxu0 %v354
    %420 = vmatprep.mubr.bf16.mxu0 %v227
    %421 = vmatmul.mubr.bf16.gmra.mrb[0].mxu0 %v226
    %v422 = vpop.f32.mrb[0].mxu0
    %v423 = vadd.f32 0.0, %v422
    %v424 = vpop.f32.mrb[0].mxu0
    %v425 = vadd.f32 0.0, %v424
    %v426 = vpop.f32.mrb[0].mxu0
    %v427 = vadd.f32 0.0, %v426
    %v428 = vpop.f32.mrb[0].mxu0
    %v429 = vadd.f32 0.0, %v428
    %430 = vdwg.mxu0
    %v431 = vmax.f32 %v423, 0.0
    %v432 = vmax.f32 %v425, 0.0
    %v433 = vmax.f32 %v427, 0.0
    %v434 = vmax.f32 %v429, 0.0
    %v435 = vpack.c.bf16 %v433, %v431
    %v436 = vpack.c.bf16 %v434, %v432
    %v437 = vld [vmem:[#allocation4] sm:$0xf]
    %v438 = vld [vmem:[#allocation4 + $0x4] sm:$0xf]
    %v439 = vld [vmem:[#allocation4 + $0x8] sm:$0xf]
    %v440 = vld [vmem:[#allocation4 + $0xc] sm:$0xf]
    %v441 = vld [vmem:[#allocation4 + $0x10] sm:$0xf]
    %v442 = vld [vmem:[#allocation4 + $0x14] sm:$0xf]
    %v443 = vld [vmem:[#allocation4 + $0x18] sm:$0xf]
    %v444 = vld [vmem:[#allocation4 + $0x1c] sm:$0xf]
    %v445 = vld [vmem:[#allocation4 + $0x20] sm:$0xf]
    %v446 = vld [vmem:[#allocation4 + $0x24] sm:$0xf]
    %v447 = vld [vmem:[#allocation4 + $0x28] sm:$0xf]
    %v448 = vld [vmem:[#allocation4 + $0x2c] sm:$0xf]
    %v449 = vld [vmem:[#allocation4 + $0x30] sm:$0xf]
    %v450 = vld [vmem:[#allocation4 + $0x34] sm:$0xf]
    %v451 = vld [vmem:[#allocation4 + $0x38] sm:$0xf]
    %v452 = vld [vmem:[#allocation4 + $0x3c] sm:$0xf]
    %v453 = vld [vmem:[#allocation4 + $0x40] sm:$0xf]
    %v454 = vld [vmem:[#allocation4 + $0x44] sm:$0xf]
    %v455 = vld [vmem:[#allocation4 + $0x48] sm:$0xf]
    %v456 = vld [vmem:[#allocation4 + $0x4c] sm:$0xf]
    %v457 = vld [vmem:[#allocation4 + $0x50] sm:$0xf]
    %v458 = vld [vmem:[#allocation4 + $0x54] sm:$0xf]
    %v459 = vld [vmem:[#allocation4 + $0x58] sm:$0xf]
    %v460 = vld [vmem:[#allocation4 + $0x5c] sm:$0xf]
    %v461 = vld [vmem:[#allocation4 + $0x60] sm:$0xf]
    %v462 = vld [vmem:[#allocation4 + $0x64] sm:$0xf]
    %v463 = vld [vmem:[#allocation4 + $0x68] sm:$0xf]
    %v464 = vld [vmem:[#allocation4 + $0x6c] sm:$0xf]
    %v465 = vld [vmem:[#allocation4 + $0x70] sm:$0xf]
    %v466 = vld [vmem:[#allocation4 + $0x74] sm:$0xf]
    %v467 = vld [vmem:[#allocation4 + $0x78] sm:$0xf]
    %v468 = vld [vmem:[#allocation4 + $0x7c] sm:$0xf]
    %v501 = vunpack.c.l.b16 %v437
    %v502 = vunpack.c.l.b16 %v438
    %v503 = vunpack.c.l.b16 %v439
    %v504 = vunpack.c.l.b16 %v440
    %v505 = vunpack.c.l.b16 %v441
    %v506 = vunpack.c.l.b16 %v442
    %v507 = vunpack.c.l.b16 %v443
    %v508 = vunpack.c.l.b16 %v444
    %v509 = vunpack.c.l.b16 %v445
    %v510 = vunpack.c.l.b16 %v446
    %v511 = vunpack.c.l.b16 %v447
    %v512 = vunpack.c.l.b16 %v448
    %v513 = vunpack.c.l.b16 %v449
    %v514 = vunpack.c.l.b16 %v450
    %v515 = vunpack.c.l.b16 %v451
    %v516 = vunpack.c.l.b16 %v452
    %v517 = vunpack.c.l.b16 %v453
    %v518 = vunpack.c.l.b16 %v454
    %v519 = vunpack.c.l.b16 %v455
    %v520 = vunpack.c.l.b16 %v456
    %v521 = vunpack.c.l.b16 %v457
    %v522 = vunpack.c.l.b16 %v458
    %v523 = vunpack.c.l.b16 %v459
    %v524 = vunpack.c.l.b16 %v460
    %v525 = vunpack.c.l.b16 %v461
    %v526 = vunpack.c.l.b16 %v462
    %v527 = vunpack.c.l.b16 %v463
    %v528 = vunpack.c.l.b16 %v464
    %v529 = vunpack.c.l.b16 %v465
    %v530 = vunpack.c.l.b16 %v466
    %v531 = vunpack.c.l.b16 %v467
    %v532 = vunpack.c.l.b16 %v468
    %v533 = vpack.c.b16 %v502, %v501
    %v534 = vpack.c.b16 %v504, %v503
    %v535 = vpack.c.b16 %v506, %v505
    %v536 = vpack.c.b16 %v508, %v507
    %v537 = vpack.c.b16 %v510, %v509
    %v538 = vpack.c.b16 %v512, %v511
    %v539 = vpack.c.b16 %v514, %v513
    %v540 = vpack.c.b16 %v516, %v515
    %v541 = vpack.c.b16 %v518, %v517
    %v542 = vpack.c.b16 %v520, %v519
    %v543 = vpack.c.b16 %v522, %v521
    %v544 = vpack.c.b16 %v524, %v523
    %v545 = vpack.c.b16 %v526, %v525
    %v546 = vpack.c.b16 %v528, %v527
    %v547 = vpack.c.b16 %v530, %v529
    %v548 = vpack.c.b16 %v532, %v531
    %565 = vmatprep.subr.bf16.mxu0 0
    %566 = vmatpush1.bf16.msra.mxu0 %v533
    %567 = vmatprep.subr.bf16.mxu0 0
    %568 = vmatpush1.bf16.msra.mxu0 %v534
    %569 = vmatprep.subr.bf16.mxu0 0
    %570 = vmatpush1.bf16.msra.mxu0 %v535
    %571 = vmatprep.subr.bf16.mxu0 0
    %572 = vmatpush1.bf16.msra.mxu0 %v536
    %573 = vmatprep.subr.bf16.mxu0 0
    %574 = vmatpush1.bf16.msra.mxu0 %v537
    %575 = vmatprep.subr.bf16.mxu0 0
    %576 = vmatpush1.bf16.msra.mxu0 %v538
    %577 = vmatprep.subr.bf16.mxu0 0
    %578 = vmatpush1.bf16.msra.mxu0 %v539
    %579 = vmatprep.subr.bf16.mxu0 0
    %580 = vmatpush1.bf16.msra.mxu0 %v540
    %581 = vmatprep.subr.bf16.mxu0 0
    %582 = vmatpush1.bf16.msra.mxu0 %v541
    %583 = vmatprep.subr.bf16.mxu0 0
    %584 = vmatpush1.bf16.msra.mxu0 %v542
    %585 = vmatprep.subr.bf16.mxu0 0
    %586 = vmatpush1.bf16.msra.mxu0 %v543
    %587 = vmatprep.subr.bf16.mxu0 0
    %588 = vmatpush1.bf16.msra.mxu0 %v544
    %589 = vmatprep.subr.bf16.mxu0 0
    %590 = vmatpush1.bf16.msra.mxu0 %v545
    %591 = vmatprep.subr.bf16.mxu0 0
    %592 = vmatpush1.bf16.msra.mxu0 %v546
    %593 = vmatprep.subr.bf16.mxu0 0
    %594 = vmatpush1.bf16.msra.mxu0 %v547
    %595 = vmatprep.subr.bf16.mxu0 0
    %596 = vmatpush1.bf16.msra.mxu0 %v548
    %597 = vmatprep.mubr.bf16.mxu0 %v436
    %598 = vmatmul.mubr.bf16.gmra.mrb[0].mxu0 %v435
    %v599 = vpop.f32.mrb[0].mxu0
    %v600 = vadd.f32 0.0, %v599
    %v601 = vpop.f32.mrb[0].mxu0
    %v602 = vpop.f32.mrb[0].mxu0
    %v603 = vadd.f32 0.0, %v602
    %v604 = vpop.f32.mrb[0].mxu0
    %605 = vdwg.mxu0
    %606 = vst [vmem:[%s3] sm:$0xff] %v600
    %607 = vst [vmem:[%s3 + $0x8] sm:$0xff] %v603
    // Predicated region
    $region22: #{qfunction_forward_batch.1} parent=1 // pred_check
      _
    $region23: #{qfunction_forward_batch.1} parent=1 // pred_check_branch
      %609 = sbr.rel (0) target = $region25
    $region24: #{qfunction_forward_batch.1} parent=1 // pred_region
      _
    $region25: #{qfunction_forward_batch.1} parent=1 // pred_fallthru
      _
    // Predicated region
    $region26: #{qfunction_forward_batch.1} parent=1 // pred_check
      _
    $region27: #{qfunction_forward_batch.1} parent=1 // pred_check_branch
      %611 = sbr.rel (0) target = $region29
    $region28: #{qfunction_forward_batch.1} parent=1 // pred_region
      _
    $region29: #{qfunction_forward_batch.1} parent=1 // pred_fallthru
      _
    %612 = vsyncpa [#allocation3], 1
    %613 = vsyncpa [#allocation5], 1

</llo_original>
